<compile_context>
chip_gen: v6e
topology: v6e:2x2x1
jax: 0.10.0
libtpu: 0.0.40
codegen_flags: <defaults>
</compile_context>

<pallas_src>
from collections import namedtuple

import jax
import jax.numpy as jnp
from jax.experimental import pallas as pl
from jax.experimental.pallas import tpu as pltpu


def _round_up(x, m):
    return (x + m - 1) // m * m


def gcn_fused_kernel(wb_ref, x0_ref, adj_ref, w_ref, h_ref, x_bufs, acc):
    """Grid point (c, p, i): chain c (user=0 / item=1), metapath p, row block i.

    Every step:   x_{p+1}[rows_i] = relu((A_p[rows_i] @ x_p) @ W_p)
                  acc[rows_i]     = (p==0 ? 0 : acc[rows_i]) + weight_b[c,p] * x_{p+1}[rows_i]
    p == last:    h[c, rows_i]    = relu(acc[rows_i])
    x_p lives in a bf16 ping-pong scratch: slot p%2 is read, slot 1-(p%2) written.
    """
    c = pl.program_id(0)
    p = pl.program_id(1)
    i = pl.program_id(2)
    n_paths = pl.num_programs(1)
    last_p = n_paths - 1
    tn = adj_ref.shape[2]

    r_slot = p % 2                      # slot holding x_p

    @pl.when(jnp.logical_and(p == 0, i == 0))
    def _seed():
        x_bufs[0] = x0_ref[0]           # x_0 = input embeddings (already bf16)

    row0 = pl.multiple_of(i * tn, tn)

    # (A_p[rows] @ x_p) @ W_p^T  -- re-associated, both matmuls on the MXU with
    # f32 accumulation.  W was pre-transposed host-side to (D_in, D_out).
    t = jnp.dot(adj_ref[0, 0], x_bufs[r_slot],
                preferred_element_type=jnp.float32)
    out = jnp.dot(t.astype(jnp.bfloat16), w_ref[0, 0],
                  preferred_element_type=jnp.float32)
    x_new = jnp.maximum(out, 0.0)                       # relu in GraphConv

    # chain x_{p+1} into the other slot (bf16 halves store traffic/residency);
    # skipped on the last metapath where it would never be read.
    x_bf16 = x_new.astype(jnp.bfloat16)

    @pl.when(jnp.logical_and(p < last_p, r_slot == 0))
    def _chain_to_slot1():
        x_bufs[1, pl.ds(row0, tn), :] = x_bf16

    @pl.when(jnp.logical_and(p < last_p, r_slot == 1))
    def _chain_to_slot0():
        x_bufs[0, pl.ds(row0, tn), :] = x_bf16

    # (weight_b * embeds).sum(0): write on p==0 (no zero-init burst), RMW after.
    contrib = wb_ref[c * n_paths + p] * x_new

    @pl.when(p == 0)
    def _acc_init():
        acc[pl.ds(row0, tn), :] = contrib

    @pl.when(p != 0)
    def _acc_rmw():
        acc[pl.ds(row0, tn), :] += contrib

    @pl.when(p == last_p)
    def _finalize():
        # final F.relu in Pretrain.forward
        h_ref[0, pl.ds(row0, tn), :] = jnp.maximum(
            acc[pl.ds(row0, tn), :], 0.0).astype(h_ref.dtype)


Cfg = namedtuple("Cfg", ["num_users", "num_items", "D", "Dp", "Nc", "Pc", "TN",
                         "vmem_limit"])


def _choose_tiles(num_users, num_items, in_size):
    """Chip-aware row tile / VMEM limit (derived from pltpu.get_tpu_info)."""
    Dp = _round_up(max(in_size, 1), 128)         # lane-dense feature dim
    n_max = max(num_users, num_items)
    n16 = _round_up(n_max, 16)                   # bf16 sublane packing
    try:
        vmem_cap = int(getattr(pltpu.get_tpu_info(), "vmem_capacity_bytes",
                               64 << 20))
    except Exception:
        vmem_cap = 64 << 20
    vmem_cap = max(vmem_cap, 32 << 20)
    # per-core residents: x0 (bf16 x2 bufs) + h (f32 x2) + W (bf16 x2)
    #                     + x ping-pong scratch (bf16) + acc scratch (f32)
    resident = (2 * n16 * Dp * 2 + 2 * n16 * Dp * 4 + 2 * Dp * Dp * 2
                + 2 * n16 * Dp * 2 + n16 * Dp * 4)
    budget = int(0.60 * vmem_cap) - resident     # headroom for compiler scratch
    tn = budget // (4 * n16) if budget > 0 else 0   # double-buffered bf16 (TN, Nc)
    tn = (tn // 16) * 16
    tn = max(16, min(tn, 1024, n16))
    nc = _round_up(n_max, tn)
    vmem_need = resident + 2 * tn * nc * 2 + (4 << 20)
    vmem_limit = min(max(16 << 20, int(1.3 * vmem_need)), vmem_cap - (8 << 20))
    return Dp, nc, tn, int(vmem_limit)


def prepare_pretrain(params):
    """One-time host-side layout plumbing (hoisted out of the forward path):
    zero-pad to lane/sublane-friendly shapes, pre-transpose fc weights, cast
    matmul operands to bf16, and stack the user/item chains on a leading
    size-2 axis so a single fused kernel handles both."""
    ue, ie = params["user_embedding"], params["item_embedding"]
    ua, ia = params["user_adj"], params["item_adj"]
    uw, iw = params["user_fc_w"], params["item_fc_w"]
    wb1, wb2 = params["weight_b1"], params["weight_b2"]

    num_users, D = ue.shape
    num_items = ie.shape[0]
    p_user, p_item = ua.shape[0], ia.shape[0]
    Pc = max(p_user, p_item)            # shorter chain padded with 0-adj / 0-wb
    Dp, Nc, TN, vmem_limit = _choose_tiles(num_users, num_items, D)
    assert Nc % TN == 0

    x0 = jnp.zeros((2, Nc, Dp), jnp.bfloat16)
    x0 = x0.at[0, :num_users, :D].set(ue.astype(jnp.bfloat16))
    x0 = x0.at[1, :num_items, :D].set(ie.astype(jnp.bfloat16))

    adj = jnp.zeros((2, Pc, Nc, Nc), jnp.bfloat16)
    adj = adj.at[0, :p_user, :num_users, :num_users].set(ua.astype(jnp.bfloat16))
    adj = adj.at[1, :p_item, :num_items, :num_items].set(ia.astype(jnp.bfloat16))

    # fc weights in PyTorch Linear layout (out, in) -> pre-transposed (in, out)
    w = jnp.zeros((2, Pc, Dp, Dp), jnp.bfloat16)
    w = w.at[0, :p_user, :D, :D].set(
        jnp.transpose(uw, (0, 2, 1)).astype(jnp.bfloat16))
    w = w.at[1, :p_item, :D, :D].set(
        jnp.transpose(iw, (0, 2, 1)).astype(jnp.bfloat16))

    wb = jnp.zeros((2, Pc), jnp.float32)
    wb = wb.at[0, :p_user].set(wb1.reshape(p_user).astype(jnp.float32))
    wb = wb.at[1, :p_item].set(wb2.reshape(p_item).astype(jnp.float32))

    cfg = Cfg(num_users, num_items, D, Dp, Nc, Pc, TN, vmem_limit)
    arrays = {"x0": x0, "adj": adj, "w": w, "wb": wb.reshape(-1)}
    return cfg, arrays


def _build_gcn_call(cfg):
    Nc, Dp, Pc, TN = cfg.Nc, cfg.Dp, cfg.Pc, cfg.TN
    NB = Nc // TN
    flops = 4 * Pc * (Nc * Nc * Dp + Nc * Dp * Dp)            # both chains
    bytes_accessed = (2 * Pc * Nc * Nc * 2                     # adjacency (bf16)
                      + 2 * Pc * Dp * Dp * 2                   # fc weights
                      + 2 * Nc * Dp * 2 + 2 * Nc * Dp * 4)     # x0 in, h out
    cost = pl.CostEstimate(flops=flops, transcendentals=0,
                           bytes_accessed=bytes_accessed)
    return pl.pallas_call(
        gcn_fused_kernel,
        out_shape=jax.ShapeDtypeStruct((2, Nc, Dp), jnp.float32),
        grid_spec=pltpu.PrefetchScalarGridSpec(
            num_scalar_prefetch=1,                              # weight_b -> SMEM
            grid=(2, Pc, NB),
            in_specs=[
                pl.BlockSpec((1, Nc, Dp), lambda c, p, i, wb: (c, 0, 0)),     # x0
                pl.BlockSpec((1, 1, TN, Nc), lambda c, p, i, wb: (c, p, i, 0)),  # adj tile
                pl.BlockSpec((1, 1, Dp, Dp), lambda c, p, i, wb: (c, p, 0, 0)),  # W_p (pre-T)
            ],
            out_specs=pl.BlockSpec((1, Nc, Dp), lambda c, p, i, wb: (c, 0, 0)),  # h
            scratch_shapes=[
                pltpu.VMEM((2, Nc, Dp), jnp.bfloat16),   # x ping-pong (x_p / x_{p+1})
                pltpu.VMEM((Nc, Dp), jnp.float32),       # weight_b accumulator
            ],
        ),
        compiler_params=pltpu.CompilerParams(
            # chain axis "parallel": user & item chains are independent, so v7x
            # can run one per TensorCore; p / row-block stay "arbitrary" because
            # the x / acc scratch chains across them.
            dimension_semantics=("parallel", "arbitrary", "arbitrary"),
            vmem_limit_bytes=cfg.vmem_limit,
        ),
        cost_estimate=cost,
    )


def build_pretrain_forward(cfg):
    gcn = _build_gcn_call(cfg)

    @jax.jit
    def forward(arrays, user_idx, item_idx, neg_item_idx):
        h = gcn(arrays["wb"], arrays["x0"], arrays["adj"], arrays["w"])
        user_emb = h[0, :cfg.num_users, :cfg.D]
        item_emb = h[1, :cfg.num_items, :cfg.D]
        return (jnp.take(user_emb, user_idx, axis=0),
                jnp.take(item_emb, item_idx, axis=0),
                jnp.take(item_emb, neg_item_idx, axis=0))

    return forward


def gcn_forward_ref(x0, adj, w, wb):
    """Pure-JAX reference mirroring the kernel's re-associated bf16/f32 math."""
    x = x0.astype(jnp.bfloat16)
    acc = None
    for p in range(adj.shape[0]):
        t = jnp.dot(adj[p].astype(jnp.bfloat16), x,
                    preferred_element_type=jnp.float32)
        out = jnp.dot(t.astype(jnp.bfloat16), w[p].T.astype(jnp.bfloat16),
                      preferred_element_type=jnp.float32)
        x_new = jnp.maximum(out, 0.0)
        contrib = wb[p, 0, 0] * x_new
        acc = contrib if acc is None else acc + contrib
        x = x_new.astype(jnp.bfloat16)
    return jnp.maximum(acc, 0.0)


def make_params(key, num_users, num_items, in_size, p_user, p_item):
    # in_size == out_size is required by the original module (GraphConv chained).
    ks = jax.random.split(key, 8)
    scale = 1.414 * jnp.sqrt(6.0 / (2.0 * in_size))  # xavier_uniform-style
    return {
        "user_embedding": jax.random.uniform(
            ks[0], (num_users, in_size), jnp.float32, -scale, scale),
        "item_embedding": jax.random.uniform(
            ks[1], (num_items, in_size), jnp.float32, -scale, scale),
        # dense stand-ins for the sparse metapath adjacency matrices
        "user_adj": jax.random.uniform(
            ks[2], (p_user, num_users, num_users), jnp.float32) * 0.1,
        "item_adj": jax.random.uniform(
            ks[3], (p_item, num_items, num_items), jnp.float32) * 0.1,
        # GraphConv.fc weights, PyTorch Linear layout (out_dim, in_dim)
        "user_fc_w": jax.random.normal(
            ks[4], (p_user, in_size, in_size), jnp.float32) * 0.1,
        "item_fc_w": jax.random.normal(
            ks[5], (p_item, in_size, in_size), jnp.float32) * 0.1,
        # weight_b1 / weight_b2 ~ U(0, 1), shape (P, 1, 1)
        "weight_b1": jax.random.uniform(ks[6], (p_user, 1, 1), jnp.float32),
        "weight_b2": jax.random.uniform(ks[7], (p_item, 1, 1), jnp.float32),
    }


if __name__ == "__main__":
    key = jax.random.PRNGKey(0)
    num_users, num_items = 32, 48
    in_size = 32
    p_user, p_item = 2, 3          # number of metapaths per key
    batch = 8
    # num_layer in the module does not affect forward() outputs (only h1 is used)

    params = make_params(key, num_users, num_items, in_size, p_user, p_item)

    cfg, arrays = prepare_pretrain(params)     # one-time prep, off the hot path
    forward = build_pretrain_forward(cfg)

    kidx = jax.random.split(jax.random.PRNGKey(1), 3)
    user_idx = jax.random.randint(kidx[0], (batch,), 0, num_users)
    item_idx = jax.random.randint(kidx[1], (batch,), 0, num_items)
    neg_item_idx = jax.random.randint(kidx[2], (batch,), 0, num_items)

    user_feat, item_feat, neg_item_feat = jax.block_until_ready(
        forward(arrays, user_idx, item_idx, neg_item_idx))

    # correctness check against a pure-JAX reference using the same bf16/f32 math
    user_emb_ref = gcn_forward_ref(params["user_embedding"], params["user_adj"],
                                   params["user_fc_w"], params["weight_b1"])
    item_emb_ref = gcn_forward_ref(params["item_embedding"], params["item_adj"],
                                   params["item_fc_w"], params["weight_b2"])
    assert user_feat.shape == (batch, in_size)
    assert jnp.allclose(user_feat, user_emb_ref[user_idx], atol=3e-3, rtol=3e-3)
    assert jnp.allclose(item_feat, item_emb_ref[item_idx], atol=3e-3, rtol=3e-3)
    assert jnp.allclose(neg_item_feat, item_emb_ref[neg_item_idx],
                        atol=3e-3, rtol=3e-3)

    print("KERNEL_OK")
</pallas_src>

<mosaic_0001>
module attributes {stable_mosaic.version = 11 : i64} {
  func.func @gcn_fused_kernel(%arg0: i32, %arg1: i32, %arg2: i32, %arg3: memref<6xf32, #tpu.memory_space<smem>>, %arg4: memref<1x48x128xbf16, #tpu.memory_space<vmem>>, %arg5: memref<1x1x48x48xbf16, #tpu.memory_space<vmem>>, %arg6: memref<1x1x128x128xbf16, #tpu.memory_space<vmem>>, %arg7: memref<1x48x128xf32, #tpu.memory_space<vmem>>, %arg8: memref<2x48x128xbf16, #tpu.memory_space<vmem>>, %arg9: memref<48x128xf32, #tpu.memory_space<vmem>>) attributes {dimension_semantics = [#tpu.dimension_semantics<parallel>, #tpu.dimension_semantics<arbitrary>, #tpu.dimension_semantics<arbitrary>], iteration_bounds = array<i64: 2, 3, 1>, scalar_prefetch = 1 : i64, scratch_operands = 2 : i64, tpu.core_type = #tpu.core_type<tc>, window_params = [{transform_indices = @transform_0, window_bounds = array<i64: 1, 48, 128>}, {transform_indices = @transform_1, window_bounds = array<i64: 1, 1, 48, 48>}, {transform_indices = @transform_2, window_bounds = array<i64: 1, 1, 128, 128>}, {transform_indices = @transform_3, window_bounds = array<i64: 1, 48, 128>}]} {
    %c2_i32 = arith.constant 2 : i32
    %c0_i32 = arith.constant 0 : i32
    %0 = arith.cmpi eq, %c2_i32, %c0_i32 : i32
    %c1_i32 = arith.constant 1 : i32
    %1 = arith.select %0, %c1_i32, %c2_i32 : i32
    %2 = arith.remsi %arg1, %1 : i32
    %c0_i32_0 = arith.constant 0 : i32
    %3 = arith.cmpi ne, %2, %c0_i32_0 : i32
    %c0_i32_1 = arith.constant 0 : i32
    %4 = arith.cmpi slt, %2, %c0_i32_1 : i32
    %c0_i32_2 = arith.constant 0 : i32
    %5 = arith.cmpi slt, %1, %c0_i32_2 : i32
    %6 = arith.xori %4, %5 : i1
    %7 = arith.andi %6, %3 : i1
    %8 = arith.addi %2, %1 : i32
    %9 = arith.select %7, %8, %2 : i32
    %c0_i32_3 = arith.constant 0 : i32
    %10 = arith.cmpi eq, %arg1, %c0_i32_3 : i32
    %c0_i32_4 = arith.constant 0 : i32
    %11 = arith.cmpi eq, %arg2, %c0_i32_4 : i32
    %12 = arith.andi %10, %11 : i1
    %13 = arith.extui %12 : i1 to i32
    %c0_i32_5 = arith.constant 0 : i32
    %14 = arith.cmpi ne, %13, %c0_i32_5 : i32
    scf.if %14 {
      %c0_29 = arith.constant 0 : index
      %c0_30 = arith.constant 0 : index
      %c0_31 = arith.constant 0 : index
      %55 = vector.load %arg4[%c0_29, %c0_30, %c0_31] : memref<1x48x128xbf16, #tpu.memory_space<vmem>>, vector<1x48x128xbf16>
      %56 = vector.shape_cast %55 : vector<1x48x128xbf16> to vector<48x128xbf16>
      %c0_32 = arith.constant 0 : index
      %c0_33 = arith.constant 0 : index
      %c0_34 = arith.constant 0 : index
      %57 = vector.load %arg8[%c0_32, %c0_33, %c0_34] : memref<2x48x128xbf16, #tpu.memory_space<vmem>>, vector<1x48x128xbf16>
      %58 = vector.shape_cast %57 : vector<1x48x128xbf16> to vector<48x128xbf16>
      %59 = vector.shape_cast %56 : vector<48x128xbf16> to vector<1x48x128xbf16>
      tpu.vector_store %arg8[%c0_32, %c0_33, %c0_34], %59 {strides = array<i32>} : memref<2x48x128xbf16, #tpu.memory_space<vmem>>, vector<1x48x128xbf16>,
    } else {
    }
    %c48_i32 = arith.constant 48 : i32
    %15 = arith.muli %arg2, %c48_i32 : i32
    %16 = tpu.assume_multiple %15, 48 : i32
    %c0 = arith.constant 0 : index
    %c0_6 = arith.constant 0 : index
    %c0_7 = arith.constant 0 : index
    %c0_8 = arith.constant 0 : index
    %17 = vector.load %arg5[%c0, %c0_6, %c0_7, %c0_8] : memref<1x1x48x48xbf16, #tpu.memory_space<vmem>>, vector<1x1x48x48xbf16>
    %18 = vector.shape_cast %17 : vector<1x1x48x48xbf16> to vector<48x48xbf16>
    %19 = arith.index_cast %9 : i32 to index
    %c0_9 = arith.constant 0 : index
    %c0_10 = arith.constant 0 : index
    %20 = vector.load %arg8[%19, %c0_9, %c0_10] : memref<2x48x128xbf16, #tpu.memory_space<vmem>>, vector<1x48x128xbf16>
    %21 = vector.shape_cast %20 : vector<1x48x128xbf16> to vector<48x128xbf16>
    %cst = arith.constant dense<0.000000e+00> : vector<48x128xf32>
    %22 = tpu.matmul %18, %21, %cst {dimension_numbers = #tpu.dot_dimension_numbers<[1], [0], [0], [1], [0, 0, 1, 1], [], []>} : vector<48x48xbf16>, vector<48x128xbf16>, vector<48x128xf32> -> vector<48x128xf32>
    %23 = arith.truncf %22 : vector<48x128xf32> to vector<48x128xbf16>
    %c0_11 = arith.constant 0 : index
    %c0_12 = arith.constant 0 : index
    %c0_13 = arith.constant 0 : index
    %c0_14 = arith.constant 0 : index
    %24 = vector.load %arg6[%c0_11, %c0_12, %c0_13, %c0_14] : memref<1x1x128x128xbf16, #tpu.memory_space<vmem>>, vector<1x1x128x128xbf16>
    %25 = vector.shape_cast %24 : vector<1x1x128x128xbf16> to vector<128x128xbf16>
    %cst_15 = arith.constant dense<0.000000e+00> : vector<48x128xf32>
    %26 = tpu.matmul %23, %25, %cst_15 {dimension_numbers = #tpu.dot_dimension_numbers<[1], [0], [0], [1], [0, 0, 1, 1], [], []>} : vector<48x128xbf16>, vector<128x128xbf16>, vector<48x128xf32> -> vector<48x128xf32>
    %cst_16 = arith.constant 0.000000e+00 : f32
    %27 = vector.broadcast %cst_16 : f32 to vector<48x128xf32>
    %28 = arith.maximumf %26, %27 : vector<48x128xf32>
    %29 = arith.truncf %28 : vector<48x128xf32> to vector<48x128xbf16>
    %c2_i32_17 = arith.constant 2 : i32
    %30 = arith.cmpi slt, %arg1, %c2_i32_17 : i32
    %c0_i32_18 = arith.constant 0 : i32
    %31 = arith.cmpi eq, %9, %c0_i32_18 : i32
    %32 = arith.andi %30, %31 : i1
    %33 = arith.extui %32 : i1 to i32
    %c0_i32_19 = arith.constant 0 : i32
    %34 = arith.cmpi ne, %33, %c0_i32_19 : i32
    scf.if %34 {
      %c1 = arith.constant 1 : index
      %55 = arith.index_cast %16 : i32 to index
      %c0_29 = arith.constant 0 : index
      %56 = vector.load %arg8[%c1, %55, %c0_29] : memref<2x48x128xbf16, #tpu.memory_space<vmem>>, vector<1x48x128xbf16>
      %57 = vector.shape_cast %56 : vector<1x48x128xbf16> to vector<48x128xbf16>
      %58 = vector.shape_cast %29 : vector<48x128xbf16> to vector<1x48x128xbf16>
      tpu.vector_store %arg8[%c1, %55, %c0_29], %58 {strides = array<i32>} : memref<2x48x128xbf16, #tpu.memory_space<vmem>>, vector<1x48x128xbf16>,
    } else {
    }
    %c2_i32_20 = arith.constant 2 : i32
    %35 = arith.cmpi slt, %arg1, %c2_i32_20 : i32
    %c1_i32_21 = arith.constant 1 : i32
    %36 = arith.cmpi eq, %9, %c1_i32_21 : i32
    %37 = arith.andi %35, %36 : i1
    %38 = arith.extui %37 : i1 to i32
    %c0_i32_22 = arith.constant 0 : i32
    %39 = arith.cmpi ne, %38, %c0_i32_22 : i32
    scf.if %39 {
      %c0_29 = arith.constant 0 : index
      %55 = arith.index_cast %16 : i32 to index
      %c0_30 = arith.constant 0 : index
      %56 = vector.load %arg8[%c0_29, %55, %c0_30] : memref<2x48x128xbf16, #tpu.memory_space<vmem>>, vector<1x48x128xbf16>
      %57 = vector.shape_cast %56 : vector<1x48x128xbf16> to vector<48x128xbf16>
      %58 = vector.shape_cast %29 : vector<48x128xbf16> to vector<1x48x128xbf16>
      tpu.vector_store %arg8[%c0_29, %55, %c0_30], %58 {strides = array<i32>} : memref<2x48x128xbf16, #tpu.memory_space<vmem>>, vector<1x48x128xbf16>,
    } else {
    }
    %c3_i32 = arith.constant 3 : i32
    %40 = arith.muli %arg0, %c3_i32 : i32
    %41 = arith.addi %40, %arg1 : i32
    %42 = arith.index_cast %41 : i32 to index
    %43 = memref.load %arg3[%42] : memref<6xf32, #tpu.memory_space<smem>>
    %44 = vector.broadcast %43 : f32 to vector<48x128xf32>
    %45 = arith.mulf %44, %28 : vector<48x128xf32>
    %c0_i32_23 = arith.constant 0 : i32
    %46 = arith.cmpi eq, %arg1, %c0_i32_23 : i32
    %47 = arith.extui %46 : i1 to i32
    %c0_i32_24 = arith.constant 0 : i32
    %48 = arith.cmpi ne, %47, %c0_i32_24 : i32
    scf.if %48 {
      %55 = arith.index_cast %16 : i32 to index
      %c0_29 = arith.constant 0 : index
      %56 = vector.load %arg9[%55, %c0_29] : memref<48x128xf32, #tpu.memory_space<vmem>>, vector<48x128xf32>
      tpu.vector_store %arg9[%55, %c0_29], %45 {strides = array<i32>} : memref<48x128xf32, #tpu.memory_space<vmem>>, vector<48x128xf32>,
    } else {
    }
    %c0_i32_25 = arith.constant 0 : i32
    %49 = arith.cmpi ne, %arg1, %c0_i32_25 : i32
    %50 = arith.extui %49 : i1 to i32
    %c0_i32_26 = arith.constant 0 : i32
    %51 = arith.cmpi ne, %50, %c0_i32_26 : i32
    scf.if %51 {
      %55 = arith.index_cast %16 : i32 to index
      %c0_29 = arith.constant 0 : index
      %56 = vector.load %arg9[%55, %c0_29] : memref<48x128xf32, #tpu.memory_space<vmem>>, vector<48x128xf32>
      %57 = arith.addf %56, %45 : vector<48x128xf32>
      %58 = arith.index_cast %16 : i32 to index
      %c0_30 = arith.constant 0 : index
      %59 = vector.load %arg9[%58, %c0_30] : memref<48x128xf32, #tpu.memory_space<vmem>>, vector<48x128xf32>
      tpu.vector_store %arg9[%58, %c0_30], %57 {strides = array<i32>} : memref<48x128xf32, #tpu.memory_space<vmem>>, vector<48x128xf32>,
    } else {
    }
    %c2_i32_27 = arith.constant 2 : i32
    %52 = arith.cmpi eq, %arg1, %c2_i32_27 : i32
    %53 = arith.extui %52 : i1 to i32
    %c0_i32_28 = arith.constant 0 : i32
    %54 = arith.cmpi ne, %53, %c0_i32_28 : i32
    scf.if %54 {
      %55 = arith.index_cast %16 : i32 to index
      %c0_29 = arith.constant 0 : index
      %56 = vector.load %arg9[%55, %c0_29] : memref<48x128xf32, #tpu.memory_space<vmem>>, vector<48x128xf32>
      %cst_30 = arith.constant 0.000000e+00 : f32
      %57 = vector.broadcast %cst_30 : f32 to vector<48x128xf32>
      %58 = arith.maximumf %56, %57 : vector<48x128xf32>
      %c0_31 = arith.constant 0 : index
      %59 = arith.index_cast %16 : i32 to index
      %c0_32 = arith.constant 0 : index
      %60 = vector.load %arg7[%c0_31, %59, %c0_32] : memref<1x48x128xf32, #tpu.memory_space<vmem>>, vector<1x48x128xf32>
      %61 = vector.shape_cast %60 : vector<1x48x128xf32> to vector<48x128xf32>
      %62 = vector.shape_cast %58 : vector<48x128xf32> to vector<1x48x128xf32>
      tpu.vector_store %arg7[%c0_31, %59, %c0_32], %62 {strides = array<i32>} : memref<1x48x128xf32, #tpu.memory_space<vmem>>, vector<1x48x128xf32>,
    } else {
    }
    return
  }
  func.func @transform_0(%arg0: i32, %arg1: i32, %arg2: i32, %arg3: memref<6xf32, #tpu.memory_space<smem>>) -> (i32, i32, i32) {
    %c0_i32 = arith.constant 0 : i32
    %c0_i32_0 = arith.constant 0 : i32
    %c0_i32_1 = arith.constant 0 : i32
    return %arg0, %c0_i32, %c0_i32_0 : i32, i32, i32
  }
  func.func @transform_1(%arg0: i32, %arg1: i32, %arg2: i32, %arg3: memref<6xf32, #tpu.memory_space<smem>>) -> (i32, i32, i32, i32) {
    %c0_i32 = arith.constant 0 : i32
    %c0_i32_0 = arith.constant 0 : i32
    return %arg0, %arg1, %arg2, %c0_i32 : i32, i32, i32, i32
  }
  func.func @transform_2(%arg0: i32, %arg1: i32, %arg2: i32, %arg3: memref<6xf32, #tpu.memory_space<smem>>) -> (i32, i32, i32, i32) {
    %c0_i32 = arith.constant 0 : i32
    %c0_i32_0 = arith.constant 0 : i32
    %c0_i32_1 = arith.constant 0 : i32
    return %arg0, %arg1, %c0_i32, %c0_i32_0 : i32, i32, i32, i32
  }
  func.func @transform_3(%arg0: i32, %arg1: i32, %arg2: i32, %arg3: memref<6xf32, #tpu.memory_space<smem>>) -> (i32, i32, i32) {
    %c0_i32 = arith.constant 0 : i32
    %c0_i32_0 = arith.constant 0 : i32
    %c0_i32_1 = arith.constant 0 : i32
    return %arg0, %c0_i32, %c0_i32_0 : i32, i32, i32
  }
}

</mosaic_0001>

<llo_original>
// kernel: forward.1
$region0: #{forward.1}
  #allocation0 [shape = 'u32[]', space=smem, size = 0x4, offset = 0x4, fixed_abs, tag = 'smem constant byte address 0x4 - core index']
  #allocation1 [shape = 'u32[144,128]{1,0:T(1,128)}', space=vmem, size = 0x12000, scoped, tag = 'internal scratch']
  #allocation2 [shape = 'bf16[2,48,128]{2,1,0:T(8,128)(2,1)}', space=vmem, size = 0x6000, scoped, tag = 'scratch operand']
  #allocation3 [shape = 'f32[48,128]{1,0:T(8,128)}', space=vmem, size = 0x6000, scoped, tag = 'scratch operand']
  #allocation4 [shape = 's32[1]{0}', space=sflag, size = 0x4, scoped, tag = 'scoped memory for forward.1']
  #allocation5 [shape = 'u8[512]{0}', space=smem, size = 0x200, scoped, tag = 'prefetched SMEM operand 0']
  %s0 = inlined_call_operand.vmem [shape: f32[6], index: 0, kind: input, shape index: {}]
  %s1 = inlined_call_operand.hbm [shape: bf16[2,48,128], index: 1, kind: input, shape index: {}]
  %s2 = inlined_call_operand.hbm [shape: bf16[2,3,48,48], index: 2, kind: input, shape index: {}]
  %s3 = inlined_call_operand.hbm [shape: bf16[2,3,128,128], index: 3, kind: input, shape index: {}]
  %s4 = inlined_call_operand.vmem [shape: f32[2,48,128], index: 4, kind: output, shape index: {}]
  %s5 = sld [smem:[#allocation0]]
  $region81: #{forward.1} parent=0
    _
  %s7 = ssub.s32 1, %s5
  %s8 = scalar_select 0, %s7, %s5
  %s9 = sshll.u32 %s0, 4
  %s10 = int_to_ptr.vmem [resolvable:$true] %s9
  %12 = dma.vmem_to_smem %s10, 16, [#allocation5], [#allocation4]
  %13 = dma.done [#allocation4], 16
  %14 = sfence
  $region1: #{forward.1} parent=0
    #allocation6 [shape = 'u8[24576]{0}', space=vmem, size = 0x6000, scoped, tag = 'input window, operand 1']
    #allocation7 [shape = 's32[2]{0}', space=sflag, size = 0x8, scoped, tag = 'scoped memory for forward.1']
    #allocation8 [shape = 'u8[24576]{0}', space=vmem, size = 0x6000, scoped, tag = 'input window, operand 2']
    #allocation9 [shape = 's32[2]{0}', space=sflag, size = 0x8, scoped, tag = 'scoped memory for forward.1']
    #allocation10 [shape = 'u8[65536]{0}', space=vmem, size = 0x10000, scoped, tag = 'input window, operand 3']
    %15 = vsyncpa [#allocation7], 0
    %s16 = scalar_lea.sflag [#allocation7], 1
    %17 = vsyncpa %s16, 0
    %18 = vsyncpa [#allocation9], 0
    %s19 = scalar_lea.sflag [#allocation9], 1
    %20 = vsyncpa %s19, 0
    loop: start=0, step=1, limit=8
    $region2: #{forward.1} parent=1 // loop_pre_header
      _
    $region3: #{forward.1} parent=1 // loop_header
      %s22 = sphi 0, %s26
      %p23 = scmp.ge.s32.totalorder %s22, 8
      %s29 = sphi 0, %s48
      %s30 = sphi 0, %s44
      %s31 = sphi 0, %s40
      %s32 = sphi 0, %s29
      %s33 = sphi 0, %s30
      %s34 = sphi 0, %s31
      %s35 = sphi 0, %s32
      %s36 = sphi 0, %s33
      %s37 = sphi 0, %s34
      %s51 = sphi 0, %s53
      %s54 = sphi 0, %s51
      %s55 = sphi 0, %s54
      %s71 = sphi 0, %s55
      %s81 = sphi 0, %s83
      %s84 = sphi 0, %s81
      %s85 = sphi 0, %s84
      %s101 = sphi 0, %s85
      %s109 = sphi 0, %s111
      %s112 = sphi 0, %s109
      %s113 = sphi 0, %s112
      %s129 = sphi 0, %s113
      %s135 = sphi 0, %s137
      %s138 = sphi 0, %s135
      %s139 = sphi 0, %s138
      %s155 = sphi 0, %s139
    $region4: #{forward.1} parent=1 // loop_header_branch
      %25 = sbr.rel (%p23) target = $region8
    $region5: #{forward.1} parent=1 // loop_body
      %s27 = ssub.s32 %s22, 1
      %s28 = ssub.s32 %s22, 2
      %s38 = sadd.s32 1, %s31
      %p39 = scmp.ge.s32.totalorder %s38, 1
      %s40 = scalar_select %p39, 0, %s38
      %s41 = sadd.s32 1, %s30
      %s42 = scalar_select %p39, %s41, %s30
      %p43 = scmp.ge.s32.totalorder %s42, 3
      %s44 = scalar_select %p43, 0, %s42
      %s45 = sadd.s32 1, %s29
      %s46 = scalar_select %p43, %s45, %s29
      %p47 = scmp.ge.s32.totalorder %s46, 2
      %s48 = scalar_select %p47, 0, %s46
      %s49 = ssub.s32 %s29, %s48
      %p50 = scmp.eq.s32.totalorder %s49, 0
      %s52 = sadd.s32 %s51, 1
      %s53 = scalar_select %p50, %s51, %s52
      %p56 = pneg %p50
      %p57 = scmp.eq.s32.totalorder %s22, 5
      %p58 = por %p56, %p57
      %p59 = scmp.ne.s32.totalorder %s51, %s54
      %p60 = scmp.eq.s32.totalorder %s22, 0
      %p61 = por %p59, %p60
      %p62 = scmp.ne.s32.totalorder %s51, %s54
      %p63 = scmp.eq.s32.totalorder %s27, 5
      %p64 = por %p62, %p63
      %p65 = scmp.ne.s32.totalorder %s54, %s55
      %p66 = scmp.eq.s32.totalorder %s27, 0
      %p67 = por %p65, %p66
      %p68 = scmp.ne.s32.totalorder %s54, %s55
      %p69 = scmp.eq.s32.totalorder %s28, 5
      %p70 = por %p68, %p69
      %p72 = scmp.ne.s32.totalorder %s55, %s71
      %p73 = scmp.eq.s32.totalorder %s28, 0
      %p74 = por %p72, %p73
      %s75 = ssub.s32 %s29, %s48
      %s76 = ssub.s32 %s30, %s44
      %s77 = sor.u32 %s75, %s76
      %s78 = ssub.s32 %s31, %s40
      %s79 = sor.u32 %s77, %s78
      %p80 = scmp.eq.s32.totalorder %s79, 0
      %s82 = sadd.s32 %s81, 1
      %s83 = scalar_select %p80, %s81, %s82
      %p86 = pneg %p80
      %p87 = scmp.eq.s32.totalorder %s22, 5
      %p88 = por %p86, %p87
      %p89 = scmp.ne.s32.totalorder %s81, %s84
      %p90 = scmp.eq.s32.totalorder %s22, 0
      %p91 = por %p89, %p90
      %p92 = scmp.ne.s32.totalorder %s81, %s84
      %p93 = scmp.eq.s32.totalorder %s27, 5
      %p94 = por %p92, %p93
      %p95 = scmp.ne.s32.totalorder %s84, %s85
      %p96 = scmp.eq.s32.totalorder %s27, 0
      %p97 = por %p95, %p96
      %p98 = scmp.ne.s32.totalorder %s84, %s85
      %p99 = scmp.eq.s32.totalorder %s28, 5
      %p100 = por %p98, %p99
      %p102 = scmp.ne.s32.totalorder %s85, %s101
      %p103 = scmp.eq.s32.totalorder %s28, 0
      %p104 = por %p102, %p103
      %s105 = ssub.s32 %s29, %s48
      %s106 = ssub.s32 %s30, %s44
      %s107 = sor.u32 %s105, %s106
      %p108 = scmp.eq.s32.totalorder %s107, 0
      %s110 = sadd.s32 %s109, 1
      %s111 = scalar_select %p108, %s109, %s110
      %p114 = pneg %p108
      %p115 = scmp.eq.s32.totalorder %s22, 5
      %p116 = por %p114, %p115
      %p117 = scmp.ne.s32.totalorder %s109, %s112
      %p118 = scmp.eq.s32.totalorder %s22, 0
      %p119 = por %p117, %p118
      %p120 = scmp.ne.s32.totalorder %s109, %s112
      %p121 = scmp.eq.s32.totalorder %s27, 5
      %p122 = por %p120, %p121
      %p123 = scmp.ne.s32.totalorder %s112, %s113
      %p124 = scmp.eq.s32.totalorder %s27, 0
      %p125 = por %p123, %p124
      %p126 = scmp.ne.s32.totalorder %s112, %s113
      %p127 = scmp.eq.s32.totalorder %s28, 5
      %p128 = por %p126, %p127
      %p130 = scmp.ne.s32.totalorder %s113, %s129
      %p131 = scmp.eq.s32.totalorder %s28, 0
      %p132 = por %p130, %p131
      %s133 = ssub.s32 %s29, %s48
      %p134 = scmp.eq.s32.totalorder %s133, 0
      %s136 = sadd.s32 %s135, 1
      %s137 = scalar_select %p134, %s135, %s136
      %p140 = pneg %p134
      %p141 = scmp.eq.s32.totalorder %s22, 5
      %p142 = por %p140, %p141
      %p143 = scmp.ne.s32.totalorder %s135, %s138
      %p144 = scmp.eq.s32.totalorder %s22, 0
      %p145 = por %p143, %p144
      %p146 = scmp.ne.s32.totalorder %s135, %s138
      %p147 = scmp.eq.s32.totalorder %s27, 5
      %p148 = por %p146, %p147
      %p149 = scmp.ne.s32.totalorder %s138, %s139
      %p150 = scmp.eq.s32.totalorder %s27, 0
      %p151 = por %p149, %p150
      %p152 = scmp.ne.s32.totalorder %s138, %s139
      %p153 = scmp.eq.s32.totalorder %s28, 5
      %p154 = por %p152, %p153
      %p156 = scmp.ne.s32.totalorder %s139, %s155
      %p157 = scmp.eq.s32.totalorder %s28, 0
      %p158 = por %p156, %p157
      %p159 = scmp.le.s32.totalorder 1, %s22
      %p160 = scmp.lt.s32.totalorder %s22, 7
      %p161 = pnand %p159, %p160
      %p162 = pneg %p161
      // Predicated region
      $region9: #{forward.1} parent=5 // pred_check
        _
      $region10: #{forward.1} parent=5 // pred_check_branch
        %164 = sbr.rel (%p161) target = $region12
      $region11: #{forward.1} parent=5 // pred_region
        %s165 = ssub.s32 %s22, 1
      $region12: #{forward.1} parent=5 // pred_fallthru
        _
      %p166 = scmp.lt.s32.totalorder %s22, 6
      // Predicated region
      $region13: #{forward.1} parent=5 // pred_check
        %p167 = pneg %p166
      $region14: #{forward.1} parent=5 // pred_check_branch
        %169 = sbr.rel (%p167) target = $region16
      $region15: #{forward.1} parent=5 // pred_region
        // Predicated region
        $region17: #{forward.1} parent=15 // pred_check
          %p170 = pneg %p61
        $region18: #{forward.1} parent=15 // pred_check_branch
          %172 = sbr.rel (%p170) target = $region20
        $region19: #{forward.1} parent=15 // pred_region
          %s173 = sand.u32 %s51, 1
          %s174 = scalar_lea.sflag [#allocation7], %s173
          %s175 = sand.u32 %s51, 1
          %s176 = smul.addr %s175, 24
          %s177 = scalar_lea.vmem [#allocation6], %s176
          %s179 = ssub.s32 384, 384
          %180 = vsyncadd %s174, %s179
          %s181 = smul.addr %s29, 6
          %s182 = smul.addr %s181, 64
          %s183 = scalar_lea.hbm %s1, %s182
          %s184 = sshll.u32 %s177, 4
          %s185 = int_to_ptr.vmem [resolvable:$true] %s184
          %190 = dma.hbm_to_vmem [thread:$0]  %s183, 384, %s185, %s174, 64, 64, 4
        $region20: #{forward.1} parent=15 // pred_fallthru
          _
        // Predicated region
        $region21: #{forward.1} parent=15 // pred_check
          %p191 = pneg %p91
        $region22: #{forward.1} parent=15 // pred_check_branch
          %193 = sbr.rel (%p191) target = $region24
        $region23: #{forward.1} parent=15 // pred_region
          %s194 = sand.u32 %s22, 1
          %s195 = scalar_lea.sflag [#allocation9], %s194
          %s196 = sand.u32 %s81, 1
          %s197 = smul.addr %s196, 24
          %s198 = scalar_lea.vmem [#allocation8], %s197
          %s199 = smul.u32 6, %s31
          %s201 = ssub.s32 384, 384
          %202 = vsyncadd %s195, %s201
          %s203 = smul.addr %s30, 6
          %s204 = sadd.s32 %s199, %s203
          %s205 = smul.addr %s29, 18
          %s206 = sadd.s32 %s204, %s205
          %s207 = smul.addr %s206, 64
          %s208 = scalar_lea.hbm %s2, %s207
          %s209 = sshll.u32 %s198, 4
          %s210 = int_to_ptr.vmem [resolvable:$true] %s209
          %215 = dma.hbm_to_vmem [thread:$0]  %s208, 384, %s210, %s195, 64, 64, 4
        $region24: #{forward.1} parent=15 // pred_fallthru
          _
        // Predicated region
        $region25: #{forward.1} parent=15 // pred_check
          %p216 = pneg %p119
        $region26: #{forward.1} parent=15 // pred_check_branch
          %218 = sbr.rel (%p216) target = $region28
        $region27: #{forward.1} parent=15 // pred_region
          %s219 = sand.u32 %s22, 1
          %s220 = scalar_lea.sflag [#allocation9], %s219
          %s221 = sand.u32 %s109, 1
          %s222 = smul.addr %s221, 64
          %s223 = scalar_lea.vmem [#allocation10], %s222
          %s225 = ssub.s32 1024, 1024
          %226 = vsyncadd %s220, %s225
          %s227 = smul.addr %s30, 16
          %s228 = smul.addr %s29, 48
          %s229 = sadd.s32 %s227, %s228
          %s230 = smul.addr %s229, 64
          %s231 = scalar_lea.hbm %s3, %s230
          %s232 = sshll.u32 %s223, 4
          %s233 = int_to_ptr.vmem [resolvable:$true] %s232
          %238 = dma.hbm_to_vmem [thread:$0]  %s231, 1024, %s233, %s220, 64, 64, 4
        $region28: #{forward.1} parent=15 // pred_fallthru
          _
      $region16: #{forward.1} parent=5 // pred_fallthru
        _
      %p239 = scmp.le.s32.totalorder 1, %s22
      %p240 = scmp.lt.s32.totalorder %s22, 7
      %p241 = pnand %p239, %p240
      %p242 = pneg %p241
      // Predicated region
      $region29: #{forward.1} parent=5 // pred_check
        _
      $region30: #{forward.1} parent=5 // pred_check_branch
        %244 = sbr.rel (%p241) target = $region32
      $region31: #{forward.1} parent=5 // pred_region
        %s245 = ssub.s32 %s22, 1
        %s246 = sand.u32 %s54, 1
        %s247 = scalar_lea.sflag [#allocation7], %s246
        %s248 = sand.u32 %s54, 1
        %s249 = smul.addr %s248, 24
        %s250 = scalar_lea.vmem [#allocation6], %s249
        // Predicated region
        $region33: #{forward.1} parent=31 // pred_check
          %p251 = pneg %p67
        $region34: #{forward.1} parent=31 // pred_check_branch
          %253 = sbr.rel (%p251) target = $region36
        $region35: #{forward.1} parent=31 // pred_region
          %254 = dma.done %s247, 384
        $region36: #{forward.1} parent=31 // pred_fallthru
          _
        %s255 = sand.u32 %s27, 1
        %s256 = scalar_lea.sflag [#allocation9], %s255
        %s257 = sand.u32 %s84, 1
        %s258 = smul.addr %s257, 24
        %s259 = scalar_lea.vmem [#allocation8], %s258
        // Predicated region
        $region37: #{forward.1} parent=31 // pred_check
          %p260 = pneg %p97
        $region38: #{forward.1} parent=31 // pred_check_branch
          %262 = sbr.rel (%p260) target = $region40
        $region39: #{forward.1} parent=31 // pred_region
          %263 = dma.done %s256, 384
        $region40: #{forward.1} parent=31 // pred_fallthru
          _
        %s264 = sand.u32 %s27, 1
        %s265 = scalar_lea.sflag [#allocation9], %s264
        %s266 = sand.u32 %s112, 1
        %s267 = smul.addr %s266, 64
        %s268 = scalar_lea.vmem [#allocation10], %s267
        // Predicated region
        $region41: #{forward.1} parent=31 // pred_check
          %p269 = pneg %p125
        $region42: #{forward.1} parent=31 // pred_check_branch
          %271 = sbr.rel (%p269) target = $region44
        $region43: #{forward.1} parent=31 // pred_region
          %272 = dma.done %s265, 1024
        $region44: #{forward.1} parent=31 // pred_fallthru
          _
        %s273 = sand.u32 %s54, 1
        %s274 = scalar_lea.sflag [#allocation7], %s273
        %s275 = sand.u32 %s54, 1
        %s276 = smul.addr %s275, 24
        %s277 = scalar_lea.vmem [#allocation6], %s276
        %p278 = pneg %p67
        %p279 = pneg %p64
        %s280 = sand.u32 %s27, 1
        %s281 = scalar_lea.sflag [#allocation9], %s280
        %s282 = sand.u32 %s84, 1
        %s283 = smul.addr %s282, 24
        %s284 = scalar_lea.vmem [#allocation8], %s283
        %p285 = pneg %p97
        %p286 = pneg %p94
        %s287 = sand.u32 %s27, 1
        %s288 = scalar_lea.sflag [#allocation9], %s287
        %s289 = sand.u32 %s112, 1
        %s290 = smul.addr %s289, 64
        %s291 = scalar_lea.vmem [#allocation10], %s290
        %p292 = pneg %p125
        %p293 = pneg %p122
        %p294 = pneg %p151
        %p295 = pneg %p148
        %p296 = scmp.lt.s32.totalorder %s32, 1
        %s297 = scalar_select %p296, %s32, 1
        %s298 = smul.addr %s297, 6
        %s299 = smul.addr %s298, 8
        %s300 = scalar_lea.vmem %s4, %s299
        %s301 = smul.u32 6, %s34
        %p302 = scmp.lt.s32.totalorder %s32, 1
        %s303 = scalar_select %p302, %s32, 1
        %s304 = smul.addr %s303, 6
        %s305 = smul.addr %s304, 8
        %s306 = scalar_lea.vmem %s4, %s305
        %p308 = scmp.lt.s32.totalorder %s33, 0
        %s309 = ssub.s32 0, %s33
        %s310 = scalar_select %p308, %s309, %s33
        %s311 = sand.u32 %s310, 1
        %s312 = ssub.s32 0, %s311
        %s313 = scalar_select %p308, %s312, %s311
        %p314 = scmp.ne.s32.totalorder %s313, 0
        %p315 = scmp.lt.s32.totalorder %s313, 0
        %p316 = pnand %p315, %p314
        %p317 = pneg %p316
        %s318 = sadd.s32 %s313, 2
        %s319 = scalar_select %p317, %s318, %s313
        %p320 = scmp.eq.s32.totalorder %s33, 0
        %p321 = scmp.eq.s32.totalorder %s34, 0
        %p322 = pnand %p320, %p321
        %p323 = pneg %p322
        // Predicated region
        $region45: #{forward.1} parent=31 // pred_check
          _
        $region46: #{forward.1} parent=31 // pred_check_branch
          %325 = sbr.rel (%p322) target = $region48
        $region47: #{forward.1} parent=31 // pred_region
          %v326 = vld [vmem:[%s250] sm:$0xf]
          %v327 = vld [vmem:[%s250 + $0x4] sm:$0xf]
          %v328 = vld [vmem:[%s250 + $0x8] sm:$0xf]
          %v329 = vld [vmem:[%s250 + $0xc] sm:$0xf]
          %v330 = vld [vmem:[%s250 + $0x10] sm:$0xf]
          %v331 = vld [vmem:[%s250 + $0x14] sm:$0xf]
          %332 = vst [vmem:[#allocation2] sm:$0xf] %v326
          %333 = vst [vmem:[#allocation2 + $0x4] sm:$0xf] %v327
          %334 = vst [vmem:[#allocation2 + $0x8] sm:$0xf] %v328
          %335 = vst [vmem:[#allocation2 + $0xc] sm:$0xf] %v329
          %336 = vst [vmem:[#allocation2 + $0x10] sm:$0xf] %v330
          %337 = vst [vmem:[#allocation2 + $0x14] sm:$0xf] %v331
        $region48: #{forward.1} parent=31 // pred_fallthru
          _
        %s338 = smul.u32 %s34, 48
        %v339 = vld [vmem:[%s259] sm:$0xf]
        %v340 = vld [vmem:[%s259 + $0x4] sm:$0xf]
        %v341 = vld [vmem:[%s259 + $0x8] sm:$0xf]
        %v342 = vld [vmem:[%s259 + $0xc] sm:$0xf]
        %v343 = vld [vmem:[%s259 + $0x10] sm:$0xf]
        %v344 = vld [vmem:[%s259 + $0x14] sm:$0xf]
        %s345 = smul.u32 %s319, 6
        %s346 = smul.addr %s345, 4
        %s347 = scalar_lea.vmem [#allocation2], %s346
        %v348 = vld [vmem:[%s347] sm:$0xf]
        %v349 = vld [vmem:[%s347 + $0x4] sm:$0xf]
        %v350 = vld [vmem:[%s347 + $0x8] sm:$0xf]
        %v351 = vld [vmem:[%s347 + $0xc] sm:$0xf]
        %v352 = vld [vmem:[%s347 + $0x10] sm:$0xf]
        %v353 = vld [vmem:[%s347 + $0x14] sm:$0xf]
        %v360 = vunpack.c.l.b16 %v339
        %v361 = vunpack.c.l.b16 %v340
        %v362 = vunpack.c.l.b16 %v341
        %v363 = vunpack.c.l.b16 %v342
        %v364 = vunpack.c.l.b16 %v343
        %v365 = vunpack.c.l.b16 %v344
        %v366 = vpack.c.b16 %v361, %v360
        %v367 = vpack.c.b16 %v363, %v362
        %v368 = vpack.c.b16 %v365, %v364
        %v375 = vunpack.c.l.b16 %v348
        %v376 = vunpack.c.l.b16 %v349
        %v377 = vunpack.c.l.b16 %v350
        %v378 = vunpack.c.l.b16 %v351
        %v379 = vunpack.c.l.b16 %v352
        %v380 = vunpack.c.l.b16 %v353
        %v381 = vpack.c.b16 %v376, %v375
        %v382 = vpack.c.b16 %v378, %v377
        %v383 = vpack.c.b16 %v380, %v379
        %vm387 = vcmask 392192
        %v389 = vsel %vm387, %v366, 0
        %v392 = vsel %vm387, %v367, 0
        %v395 = vsel %vm387, %v368, 0
        %397 = vmatprep.subr.bf16.mxu0 0
        %398 = vmatpush1.bf16.msra.mxu0 0
        %399 = vmatprep.subr.bf16.mxu0 0
        %400 = vmatpush1.bf16.msra.mxu0 0
        %401 = vmatprep.subr.bf16.mxu0 0
        %402 = vmatpush1.bf16.msra.mxu0 0
        %403 = vmatprep.subr.bf16.mxu0 0
        %404 = vmatpush1.bf16.msra.mxu0 0
        %405 = vmatprep.subr.bf16.mxu0 0
        %406 = vmatpush1.bf16.msra.mxu0 0
        %407 = vmatprep.subr.bf16.mxu0 0
        %408 = vmatpush1.bf16.msra.mxu0 %v383
        %409 = vmatprep.subr.bf16.mxu0 0
        %410 = vmatpush1.bf16.msra.mxu0 %v382
        %411 = vmatprep.subr.bf16.mxu0 0
        %412 = vmatpush1.bf16.msra.mxu0 %v381
        %413 = vmatprep.subr.bf16.mxu0 0
        %414 = vmatpush2.bf16.msra.mxu0 0
        %415 = vmatprep.subr.bf16.mxu0 0
        %416 = vmatpush2.bf16.msra.mxu0 0
        %417 = vmatprep.subr.bf16.mxu0 0
        %418 = vmatpush2.bf16.msra.mxu0 0
        %419 = vmatprep.subr.bf16.mxu0 0
        %420 = vmatpush2.bf16.msra.mxu0 0
        %421 = vmatprep.subr.bf16.mxu0 0
        %422 = vmatpush2.bf16.msra.mxu0 0
        %423 = vmatprep.subr.bf16.mxu0 0
        %424 = vmatpush2.bf16.msra.mxu0 0
        %425 = vmatprep.subr.bf16.mxu0 0
        %426 = vmatpush2.bf16.msra.mxu0 0
        %427 = vmatprep.subr.bf16.mxu0 0
        %428 = vmatpush2.bf16.msra.mxu0 0
        %429 = vmatprep.mubr.bf16.mxu0 0
        %430 = vmatmul.mubr.bf16.gmra.mxu0 %v389
        %v431 = vpop.f32.mrf.mxu0
        %v432 = vadd.f32 0.0, %v431
        %v433 = vpop.f32.mrf.mxu0
        %v434 = vpop.f32.mrf.mxu0
        %v435 = vadd.f32 0.0, %v434
        %v436 = vpop.f32.mrf.mxu0
        %437 = vmatprep.mubr.bf16.mxu0 0
        %438 = vmatmul.mubr.bf16.gmra.mxu0 %v392
        %v439 = vpop.f32.mrf.mxu0
        %v440 = vadd.f32 0.0, %v439
        %v441 = vpop.f32.mrf.mxu0
        %v442 = vpop.f32.mrf.mxu0
        %v443 = vadd.f32 0.0, %v442
        %v444 = vpop.f32.mrf.mxu0
        %445 = vmatprep.mubr.bf16.mxu0 0
        %446 = vmatmul.mubr.bf16.gmra.mxu0 %v395
        %v447 = vpop.f32.mrf.mxu0
        %v448 = vadd.f32 0.0, %v447
        %v449 = vpop.f32.mrf.mxu0
        %v450 = vpop.f32.mrf.mxu0
        %v451 = vadd.f32 0.0, %v450
        %v452 = vpop.f32.mrf.mxu0
        %453 = vdwg.mxu0
        %v454 = vpack.c.bf16 %v435, %v432
        %v455 = vpack.c.bf16 %v443, %v440
        %v456 = vpack.c.bf16 %v451, %v448
        %v457 = vld [vmem:[%s268] sm:$0xf]
        %v458 = vld [vmem:[%s268 + $0x4] sm:$0xf]
        %v459 = vld [vmem:[%s268 + $0x8] sm:$0xf]
        %v460 = vld [vmem:[%s268 + $0xc] sm:$0xf]
        %v461 = vld [vmem:[%s268 + $0x10] sm:$0xf]
        %v462 = vld [vmem:[%s268 + $0x14] sm:$0xf]
        %v463 = vld [vmem:[%s268 + $0x18] sm:$0xf]
        %v464 = vld [vmem:[%s268 + $0x1c] sm:$0xf]
        %v465 = vld [vmem:[%s268 + $0x20] sm:$0xf]
        %v466 = vld [vmem:[%s268 + $0x24] sm:$0xf]
        %v467 = vld [vmem:[%s268 + $0x28] sm:$0xf]
        %v468 = vld [vmem:[%s268 + $0x2c] sm:$0xf]
        %v469 = vld [vmem:[%s268 + $0x30] sm:$0xf]
        %v470 = vld [vmem:[%s268 + $0x34] sm:$0xf]
        %v471 = vld [vmem:[%s268 + $0x38] sm:$0xf]
        %v472 = vld [vmem:[%s268 + $0x3c] sm:$0xf]
        %v489 = vunpack.c.l.b16 %v457
        %v490 = vunpack.c.l.b16 %v458
        %v491 = vunpack.c.l.b16 %v459
        %v492 = vunpack.c.l.b16 %v460
        %v493 = vunpack.c.l.b16 %v461
        %v494 = vunpack.c.l.b16 %v462
        %v495 = vunpack.c.l.b16 %v463
        %v496 = vunpack.c.l.b16 %v464
        %v497 = vunpack.c.l.b16 %v465
        %v498 = vunpack.c.l.b16 %v466
        %v499 = vunpack.c.l.b16 %v467
        %v500 = vunpack.c.l.b16 %v468
        %v501 = vunpack.c.l.b16 %v469
        %v502 = vunpack.c.l.b16 %v470
        %v503 = vunpack.c.l.b16 %v471
        %v504 = vunpack.c.l.b16 %v472
        %v505 = vpack.c.b16 %v490, %v489
        %v506 = vpack.c.b16 %v492, %v491
        %v507 = vpack.c.b16 %v494, %v493
        %v508 = vpack.c.b16 %v496, %v495
        %v509 = vpack.c.b16 %v498, %v497
        %v510 = vpack.c.b16 %v500, %v499
        %v511 = vpack.c.b16 %v502, %v501
        %v512 = vpack.c.b16 %v504, %v503
        %521 = vmatprep.subr.bf16.mxu0 0
        %522 = vmatpush1.bf16.msra.mxu0 %v512
        %523 = vmatprep.subr.bf16.mxu0 0
        %524 = vmatpush1.bf16.msra.mxu0 %v511
        %525 = vmatprep.subr.bf16.mxu0 0
        %526 = vmatpush1.bf16.msra.mxu0 %v510
        %527 = vmatprep.subr.bf16.mxu0 0
        %528 = vmatpush1.bf16.msra.mxu0 %v509
        %529 = vmatprep.subr.bf16.mxu0 0
        %530 = vmatpush1.bf16.msra.mxu0 %v508
        %531 = vmatprep.subr.bf16.mxu0 0
        %532 = vmatpush1.bf16.msra.mxu0 %v507
        %533 = vmatprep.subr.bf16.mxu0 0
        %534 = vmatpush1.bf16.msra.mxu0 %v506
        %535 = vmatprep.subr.bf16.mxu0 0
        %536 = vmatpush1.bf16.msra.mxu0 %v505
        %537 = vmatprep.subr.bf16.mxu0 0
        %538 = vmatpush2.bf16.msra.mxu0 0
        %539 = vmatprep.subr.bf16.mxu0 0
        %540 = vmatpush2.bf16.msra.mxu0 0
        %541 = vmatprep.subr.bf16.mxu0 0
        %542 = vmatpush2.bf16.msra.mxu0 0
        %543 = vmatprep.subr.bf16.mxu0 0
        %544 = vmatpush2.bf16.msra.mxu0 0
        %545 = vmatprep.subr.bf16.mxu0 0
        %546 = vmatpush2.bf16.msra.mxu0 0
        %547 = vmatprep.subr.bf16.mxu0 0
        %548 = vmatpush2.bf16.msra.mxu0 0
        %549 = vmatprep.subr.bf16.mxu0 0
        %550 = vmatpush2.bf16.msra.mxu0 0
        %551 = vmatprep.subr.bf16.mxu0 0
        %552 = vmatpush2.bf16.msra.mxu0 0
        %553 = vmatprep.mubr.bf16.mxu0 0
        %554 = vmatmul.mubr.bf16.gmra.mxu0 %v454
        %v555 = vpop.f32.mrf.mxu0
        %v556 = vadd.f32 0.0, %v555
        %v557 = vpop.f32.mrf.mxu0
        %v558 = vpop.f32.mrf.mxu0
        %v559 = vadd.f32 0.0, %v558
        %v560 = vpop.f32.mrf.mxu0
        %561 = vmatprep.mubr.bf16.mxu0 0
        %562 = vmatmul.mubr.bf16.gmra.mxu0 %v455
        %v563 = vpop.f32.mrf.mxu0
        %v564 = vadd.f32 0.0, %v563
        %v565 = vpop.f32.mrf.mxu0
        %v566 = vpop.f32.mrf.mxu0
        %v567 = vadd.f32 0.0, %v566
        %v568 = vpop.f32.mrf.mxu0
        %569 = vmatprep.mubr.bf16.mxu0 0
        %570 = vmatmul.mubr.bf16.gmra.mxu0 %v456
        %v571 = vpop.f32.mrf.mxu0
        %v572 = vadd.f32 0.0, %v571
        %v573 = vpop.f32.mrf.mxu0
        %v574 = vpop.f32.mrf.mxu0
        %v575 = vadd.f32 0.0, %v574
        %v576 = vpop.f32.mrf.mxu0
        %577 = vdwg.mxu0
        %v578 = vmax.f32 %v556, 0.0
        %v579 = vmax.f32 %v559, 0.0
        %v580 = vmax.f32 %v564, 0.0
        %v581 = vmax.f32 %v567, 0.0
        %v582 = vmax.f32 %v572, 0.0
        %v583 = vmax.f32 %v575, 0.0
        %v584 = vpack.c.bf16 %v579, %v578
        %v585 = vpack.c.bf16 %v581, %v580
        %v586 = vpack.c.bf16 %v583, %v582
        %p587 = scmp.lt.s32.totalorder %s33, 2
        %p588 = scmp.eq.s32.totalorder %s319, 0
        %p589 = pnand %p587, %p588
        %p590 = pneg %p589
        // Predicated region
        $region49: #{forward.1} parent=31 // pred_check
          _
        $region50: #{forward.1} parent=31 // pred_check_branch
          %592 = sbr.rel (%p589) target = $region52
        $region51: #{forward.1} parent=31 // pred_region
          %v596 = vunpack.c.l.b16 %v584
          %v597 = vunpack.c.h.b16 %v584
          %v598 = vunpack.c.l.b16 %v585
          %v599 = vunpack.c.h.b16 %v585
          %v600 = vunpack.c.l.b16 %v586
          %v601 = vunpack.c.h.b16 %v586
          %v602 = vpack.c.b16 %v596, %v596
          %v603 = vpack.c.b16 %v597, %v597
          %v604 = vpack.c.b16 %v598, %v598
          %v605 = vpack.c.b16 %v599, %v599
          %v606 = vpack.c.b16 %v600, %v600
          %v607 = vpack.c.b16 %v601, %v601
          %s614 = sshra.s32 %s338, 3
          %s615 = sand.u32 %s338, 7
          %s616 = sadd.s32 %s614, 6
          %s617 = smul.addr %s616, 4
          %s618 = scalar_lea.vmem [#allocation2], %s617
          %619 = vst [vmem:[%s618] sm:$0xf] %v602
          %620 = vst [vmem:[%s618 + $0x4] sm:$0xf] %v603
          %621 = vst [vmem:[%s618 + $0x8] sm:$0xf] %v604
          %622 = vst [vmem:[%s618 + $0xc] sm:$0xf] %v605
          %623 = vst [vmem:[%s618 + $0x10] sm:$0xf] %v606
          %624 = vst [vmem:[%s618 + $0x14] sm:$0xf] %v607
        $region52: #{forward.1} parent=31 // pred_fallthru
          _
        %p625 = scmp.eq.s32.totalorder %s319, 1
        %p626 = pnand %p587, %p625
        %p627 = pneg %p626
        // Predicated region
        $region53: #{forward.1} parent=31 // pred_check
          _
        $region54: #{forward.1} parent=31 // pred_check_branch
          %629 = sbr.rel (%p626) target = $region56
        $region55: #{forward.1} parent=31 // pred_region
          %v633 = vunpack.c.l.b16 %v584
          %v634 = vunpack.c.h.b16 %v584
          %v635 = vunpack.c.l.b16 %v585
          %v636 = vunpack.c.h.b16 %v585
          %v637 = vunpack.c.l.b16 %v586
          %v638 = vunpack.c.h.b16 %v586
          %v639 = vpack.c.b16 %v633, %v633
          %v640 = vpack.c.b16 %v634, %v634
          %v641 = vpack.c.b16 %v635, %v635
          %v642 = vpack.c.b16 %v636, %v636
          %v643 = vpack.c.b16 %v637, %v637
          %v644 = vpack.c.b16 %v638, %v638
          %s651 = sshra.s32 %s338, 3
          %s652 = sand.u32 %s338, 7
          %s653 = smul.addr %s651, 4
          %s654 = scalar_lea.vmem [#allocation2], %s653
          %655 = vst [vmem:[%s654] sm:$0xf] %v639
          %656 = vst [vmem:[%s654 + $0x4] sm:$0xf] %v640
          %657 = vst [vmem:[%s654 + $0x8] sm:$0xf] %v641
          %658 = vst [vmem:[%s654 + $0xc] sm:$0xf] %v642
          %659 = vst [vmem:[%s654 + $0x10] sm:$0xf] %v643
          %660 = vst [vmem:[%s654 + $0x14] sm:$0xf] %v644
        $region56: #{forward.1} parent=31 // pred_fallthru
          _
        %s661 = smul.u32 %s32, 3
        %s662 = sadd.s32 %s661, %s33
        %s663 = sld [smem:[#allocation5 + %s662]]
        %v664 = vstv %s663
        %v665 = vmul.f32 %v664, %v578
        %v666 = vmul.f32 %v664, %v579
        %v667 = vmul.f32 %v664, %v580
        %v668 = vmul.f32 %v664, %v581
        %v669 = vmul.f32 %v664, %v582
        %v670 = vmul.f32 %v664, %v583
        // Predicated region
        $region57: #{forward.1} parent=31 // pred_check
          %p671 = pneg %p320
        $region58: #{forward.1} parent=31 // pred_check_branch
          %673 = sbr.rel (%p671) target = $region60
        $region59: #{forward.1} parent=31 // pred_region
          %s674 = scalar_lea.vmem [#allocation3], %s338
          %675 = vst [vmem:[%s674] sm:$0xff] %v665
          %676 = vst [vmem:[%s674 + $0x8] sm:$0xff] %v666
          %677 = vst [vmem:[%s674 + $0x10] sm:$0xff] %v667
          %678 = vst [vmem:[%s674 + $0x18] sm:$0xff] %v668
          %679 = vst [vmem:[%s674 + $0x20] sm:$0xff] %v669
          %680 = vst [vmem:[%s674 + $0x28] sm:$0xff] %v670
        $region60: #{forward.1} parent=31 // pred_fallthru
          _
        %p681 = scmp.ne.s32.totalorder %s33, 0
        // Predicated region
        $region61: #{forward.1} parent=31 // pred_check
          %p682 = pneg %p681
        $region62: #{forward.1} parent=31 // pred_check_branch
          %684 = sbr.rel (%p682) target = $region64
        $region63: #{forward.1} parent=31 // pred_region
          %s685 = scalar_lea.vmem [#allocation3], %s338
          %v686 = vld [vmem:[%s685] sm:$0xff]
          %v687 = vld [vmem:[%s685 + $0x8] sm:$0xff]
          %v688 = vld [vmem:[%s685 + $0x10] sm:$0xff]
          %v689 = vld [vmem:[%s685 + $0x18] sm:$0xff]
          %v690 = vld [vmem:[%s685 + $0x20] sm:$0xff]
          %v691 = vld [vmem:[%s685 + $0x28] sm:$0xff]
          %v692 = vadd.f32 %v686, %v665
          %v693 = vadd.f32 %v687, %v666
          %v694 = vadd.f32 %v688, %v667
          %v695 = vadd.f32 %v689, %v668
          %v696 = vadd.f32 %v690, %v669
          %v697 = vadd.f32 %v691, %v670
          %698 = vst [vmem:[%s685] sm:$0xff] %v692
          %699 = vst [vmem:[%s685 + $0x8] sm:$0xff] %v693
          %700 = vst [vmem:[%s685 + $0x10] sm:$0xff] %v694
          %701 = vst [vmem:[%s685 + $0x18] sm:$0xff] %v695
          %702 = vst [vmem:[%s685 + $0x20] sm:$0xff] %v696
          %703 = vst [vmem:[%s685 + $0x28] sm:$0xff] %v697
        $region64: #{forward.1} parent=31 // pred_fallthru
          _
        %p704 = scmp.eq.s32.totalorder %s33, 2
        // Predicated region
        $region65: #{forward.1} parent=31 // pred_check
          %p705 = pneg %p704
        $region66: #{forward.1} parent=31 // pred_check_branch
          %707 = sbr.rel (%p705) target = $region68
        $region67: #{forward.1} parent=31 // pred_region
          %s708 = scalar_lea.vmem [#allocation3], %s338
          %v709 = vld [vmem:[%s708] sm:$0xff]
          %v710 = vld [vmem:[%s708 + $0x8] sm:$0xff]
          %v711 = vld [vmem:[%s708 + $0x10] sm:$0xff]
          %v712 = vld [vmem:[%s708 + $0x18] sm:$0xff]
          %v713 = vld [vmem:[%s708 + $0x20] sm:$0xff]
          %v714 = vld [vmem:[%s708 + $0x28] sm:$0xff]
          %v715 = vmax.f32 %v709, 0.0
          %v716 = vmax.f32 %v710, 0.0
          %v717 = vmax.f32 %v711, 0.0
          %v718 = vmax.f32 %v712, 0.0
          %v719 = vmax.f32 %v713, 0.0
          %v720 = vmax.f32 %v714, 0.0
          %s721 = scalar_lea.vmem %s306, %s338
          %722 = vst [vmem:[%s721] sm:$0xff] %v715
          %723 = vst [vmem:[%s721 + $0x8] sm:$0xff] %v716
          %724 = vst [vmem:[%s721 + $0x10] sm:$0xff] %v717
          %725 = vst [vmem:[%s721 + $0x18] sm:$0xff] %v718
          %726 = vst [vmem:[%s721 + $0x20] sm:$0xff] %v719
          %727 = vst [vmem:[%s721 + $0x28] sm:$0xff] %v720
        $region68: #{forward.1} parent=31 // pred_fallthru
          _
        %p728 = scmp.lt.s32.totalorder %s32, 1
        %s729 = scalar_select %p728, %s32, 1
        %s730 = smul.addr %s729, 6
        %s731 = smul.addr %s730, 8
        %s732 = scalar_lea.vmem %s4, %s731
        // Predicated region
        $region69: #{forward.1} parent=31 // pred_check
          %p733 = pneg %p148
        $region70: #{forward.1} parent=31 // pred_check_branch
          %735 = sbr.rel (%p733) target = $region72
        $region71: #{forward.1} parent=31 // pred_region
          _
        $region72: #{forward.1} parent=31 // pred_fallthru
          _
      $region32: #{forward.1} parent=5 // pred_fallthru
        _
      %p736 = scmp.le.s32.totalorder 2, %s22
      // Predicated region
      $region73: #{forward.1} parent=5 // pred_check
        %p737 = pneg %p736
      $region74: #{forward.1} parent=5 // pred_check_branch
        %739 = sbr.rel (%p737) target = $region76
      $region75: #{forward.1} parent=5 // pred_region
        %s740 = ssub.s32 %s22, 2
        // Predicated region
        $region77: #{forward.1} parent=75 // pred_check
          %p741 = pneg %p154
        $region78: #{forward.1} parent=75 // pred_check_branch
          %743 = sbr.rel (%p741) target = $region80
        $region79: #{forward.1} parent=75 // pred_region
          %p744 = scmp.lt.s32.totalorder %s35, 1
          %s745 = scalar_select %p744, %s35, 1
          %s746 = smul.addr %s745, 6
          %s747 = smul.addr %s746, 8
          %s748 = scalar_lea.vmem %s4, %s747
        $region80: #{forward.1} parent=75 // pred_fallthru
          _
      $region76: #{forward.1} parent=5 // pred_fallthru
        _
    $region6: #{forward.1} parent=1 // loop_footer
      %s26 = sadd.s32 1, %s22
    $region7: #{forward.1} parent=1 // loop_footer_branch
      %21 = sbr.rel target = $region3
    $region8: #{forward.1} parent=1 // loop_exit
      _
    %749 = vsyncpa [#allocation7], 1
    %s750 = scalar_lea.sflag [#allocation7], 1
    %751 = vsyncpa %s750, 1
    %752 = vsyncpa [#allocation9], 1
    %s753 = scalar_lea.sflag [#allocation9], 1
    %754 = vsyncpa %s753, 1

</llo_original>
